<compile_context>
chip_gen: v7x
topology: tpu7x:2x2x1
jax: 0.10.0
libtpu: 0.0.40
codegen_flags: <defaults>
</compile_context>

<pallas_src>
import jax
import jax.numpy as jnp
from jax import lax
from jax.experimental import pallas as pl
from jax.experimental.pallas import tpu as pltpu

# 1-D gaussian taps (symmetric): [K0, K1, K2, K1, K0]
K0, K1, K2 = 0.05, 0.25, 0.4
_TAPS = ((-2, K0), (-1, K1), (0, K2), (1, K1), (2, K0))


# ----------------------------------------------------------------------------
# Path 1: MXU / dense-banded-operator formulation (small & mid-size frames).
# ----------------------------------------------------------------------------
def _axis_operator(n):
    """Dense (out, in) matrix of (2*G) @ diag(even) @ G along one axis.

    G is the 1-D [.05,.25,.4,.25,.05] blur with replicate (clamped) boundaries;
    diag(even) is the even-index mask; the factor 2 is this axis' share of the
    original x4.
    """
    idx = jnp.arange(n)
    g = jnp.zeros((n, n), jnp.float32)
    for off, wgt in _TAPS:
        j = jnp.clip(idx + off, 0, n - 1)
        g = g.at[idx, j].add(wgt)
    even = (idx % 2 == 0).astype(jnp.float32)
    return (2.0 * g) @ (even[:, None] * g)  # (out, in)


def _laplace_mxu_kernel(x_ref, awt_ref, ah_ref, o_ref):
    awt = awt_ref[...]              # (W, W) = Aw^T  (in, out) -> lane contraction
    ah = ah_ref[...]                # (H, H) = Ah    (out, in)
    nb = x_ref.shape[0]
    for n in range(nb):             # static unroll over frames in the block
        x = x_ref[n].astype(jnp.float32)                       # (H, W)
        t = jnp.dot(x, awt, preferred_element_type=jnp.float32,
                    precision=lax.Precision.HIGHEST)           # W pass
        z = jnp.dot(ah, t, preferred_element_type=jnp.float32,
                    precision=lax.Precision.HIGHEST)           # H pass
        o_ref[n] = (x - z).astype(o_ref.dtype)


# ----------------------------------------------------------------------------
# Path 2: VPU separable path (frames beyond the dense-operator cap).
# ----------------------------------------------------------------------------
def _blur5_lanes(x, idx_w, k0, k1, k2, roll):
    """Symmetric 5-tap blur along the last (lane) axis, replicate boundary."""
    w = x.shape[-1]
    left = x[..., 0:1]              # (nb, H, 1), broadcast by the lane mask
    right = x[..., w - 1:w]
    xm1 = jnp.where(idx_w < 1, left, roll(x, 1, 2))
    xm2 = jnp.where(idx_w < 2, left, roll(x, 2, 2))
    xp1 = jnp.where(idx_w >= w - 1, right, roll(x, -1, 2))
    xp2 = jnp.where(idx_w >= w - 2, right, roll(x, -2, 2))
    return k2 * x + k1 * (xm1 + xp1) + k0 * (xm2 + xp2)


def _blur5_sublanes(x, idx_h, k0, k1, k2, roll):
    """Symmetric 5-tap blur along axis 1 (rows / sublanes), replicate boundary."""
    h = x.shape[1]
    top = x[:, 0:1, :]
    bot = x[:, h - 1:h, :]
    xm1 = jnp.where(idx_h < 1, top, roll(x, 1, 1))
    xm2 = jnp.where(idx_h < 2, top, roll(x, 2, 1))
    xp1 = jnp.where(idx_h >= h - 1, bot, roll(x, -1, 1))
    xp2 = jnp.where(idx_h >= h - 2, bot, roll(x, -2, 1))
    return k2 * x + k1 * (xm1 + xp1) + k0 * (xm2 + xp2)


def _laplace_separable(x, roll):
    """out = x - Ah(Aw(x)) with roll-based taps.

    Shared by the Pallas VPU kernel (roll=pltpu.roll) and the host-side math
    check in __main__ (roll=jnp.roll; pltpu.roll has jnp.roll semantics).
    Blocks hold whole frames, so local index == absolute index for parity.
    """
    _, h, w = x.shape
    idx_w = lax.broadcasted_iota(jnp.int32, (1, 1, w), 2)   # broadcast masks
    idx_h = lax.broadcasted_iota(jnp.int32, (1, h, 1), 1)
    col_even = (idx_w & 1) == 0
    row_even = (idx_h & 1) == 0

    # W pass: Aw = Gw(2k) o mask_even_cols o Gw(k)
    f = _blur5_lanes(x, idx_w, K0, K1, K2, roll)
    aw = _blur5_lanes(jnp.where(col_even, f, 0.0), idx_w,
                      2 * K0, 2 * K1, 2 * K2, roll)
    # H pass: Ah = Gh(2k) o mask_even_rows o Gh(k)
    fh = _blur5_sublanes(aw, idx_h, K0, K1, K2, roll)
    ah = _blur5_sublanes(jnp.where(row_even, fh, 0.0), idx_h,
                         2 * K0, 2 * K1, 2 * K2, roll)
    return x - ah


def _laplace_vpu_kernel(x_ref, o_ref):
    x = x_ref[...].astype(jnp.float32)
    o_ref[...] = _laplace_separable(x, pltpu.roll).astype(o_ref.dtype)


# ----------------------------------------------------------------------------
# Wrapper: generation-aware dispatch, blocking and VMEM budgeting.
# ----------------------------------------------------------------------------
def _vmem_capacity_bytes():
    try:
        return int(pltpu.get_tpu_info().vmem_capacity_bytes)
    except Exception:
        return 64 * 2**20  # conservative: v7x per-TensorCore VMEM


def _dense_operator_cap():
    """Largest H/W for which the dense Aw/Ah (MXU) path is used."""
    try:
        kind = jax.devices()[0].device_kind.lower()
    except Exception:
        kind = ""
    # v5e's 197 TF/s MXU cannot absorb dense per-axis operators much past
    # ~512^2; v6e/v7x (918/996 TF/s) stay under the HBM roofline up to ~1k.
    if "v6" in kind or "v7" in kind:
        return 1024
    return 512


def laplace_op(x):
    """x: (N, 1, H, W) -> (N, 1, H, W); matches Laplace_op.forward."""
    N, C, H, W = x.shape
    if C != 1:
        raise ValueError("Laplace_op's conv weight is (1,1,5,5): C must be 1")
    if H < 4 or W < 4:
        raise ValueError("H and W must be >= 4")
    x3 = x.reshape(N, H, W)

    vmem_cap = _vmem_capacity_bytes()
    usable = max(32 * 2**20, vmem_cap - 16 * 2**20)   # headroom for Mosaic
    frame_f32 = H * W * 4
    frame_in = H * W * x3.dtype.itemsize

    if max(H, W) <= _dense_operator_cap():
        # ---- MXU path ----
        # Frames per grid step: bounded by the f32 block footprint, a small
        # static-unroll cap, and ">= 2 grid steps when N >= 2" (v7x megacore).
        two_step_cap = (N + 1) // 2 if N >= 2 else 1
        nb = max(1, min((3 * 2**20) // frame_f32, two_step_cap, 8, N))

        awt = _axis_operator(W).T    # (in, out): x @ awt contracts lanes
        ah = _axis_operator(H)       # (out, in)

        mats_bytes = (H * H + W * W) * 4
        est = 4 * nb * frame_in + 2 * mats_bytes + 6 * frame_f32
        vmem_limit = int(min(max(32 * 2**20, 2 * est), usable))

        out = pl.pallas_call(
            _laplace_mxu_kernel,
            out_shape=jax.ShapeDtypeStruct((N, H, W), x.dtype),
            grid=(pl.cdiv(N, nb),),
            in_specs=[
                pl.BlockSpec((nb, H, W), lambda i: (i, 0, 0)),
                pl.BlockSpec((W, W), lambda i: (0, 0)),
                pl.BlockSpec((H, H), lambda i: (0, 0)),
            ],
            out_specs=pl.BlockSpec((nb, H, W), lambda i: (i, 0, 0)),
            compiler_params=pltpu.CompilerParams(
                dimension_semantics=("parallel",),
                vmem_limit_bytes=vmem_limit,
            ),
        )(x3, awt, ah)
    else:
        # ---- VPU fallback for frames too large for the dense operators ----
        # Whole frames per step; roll-based taps + broadcast parity masks.
        # TODO(synk): H-tiled 4-row-halo variant (manual make_async_copy) for
        # frames that overflow whole-frame VMEM (~1.4k x 1.4k and beyond).
        nb = 1
        est = 4 * nb * frame_in + 12 * nb * frame_f32
        vmem_limit = int(min(max(32 * 2**20, 2 * est), usable))

        out = pl.pallas_call(
            _laplace_vpu_kernel,
            out_shape=jax.ShapeDtypeStruct((N, H, W), x.dtype),
            grid=(pl.cdiv(N, nb),),
            in_specs=[pl.BlockSpec((nb, H, W), lambda i: (i, 0, 0))],
            out_specs=pl.BlockSpec((nb, H, W), lambda i: (i, 0, 0)),
            compiler_params=pltpu.CompilerParams(
                dimension_semantics=("parallel",),
                vmem_limit_bytes=vmem_limit,
            ),
        )(x3)
    return out.reshape(N, C, H, W)


# ---- pure-JAX reference (runtime correctness check only) ----
def _ref_conv_gauss(img):
    k = jnp.asarray([K0, K1, K2, K1, K0], jnp.float32)
    k2 = jnp.outer(k, k)[None, None]               # (1,1,5,5)
    p = jnp.pad(img, ((0, 0), (0, 0), (2, 2), (2, 2)), mode="edge")
    return lax.conv_general_dilated(p, k2, (1, 1), "VALID",
                                    dimension_numbers=("NCHW", "OIHW", "NCHW"),
                                    precision=lax.Precision.HIGHEST)


def _ref_laplace(x):
    filtered = _ref_conv_gauss(x)
    new_filter = jnp.zeros_like(filtered)
    new_filter = new_filter.at[:, :, ::2, ::2].set(filtered[:, :, ::2, ::2] * 4.0)
    return x - _ref_conv_gauss(new_filter)


if __name__ == "__main__":
    key = jax.random.PRNGKey(0)

    # Shape implied by the module: NCHW with a single channel.
    x = jax.random.normal(key, (2, 1, 16, 16), dtype=jnp.float32)
    out = jax.block_until_ready(laplace_op(x))
    assert out.shape == x.shape and out.dtype == x.dtype
    err = float(jnp.max(jnp.abs(out - _ref_laplace(x))))
    assert err < 1e-4, err

    # Odd / non-aligned spatial dims exercise replicate borders, parity, and the
    # cdiv grid (N=3 with nb=2 -> masked trailing block).
    x2 = jax.random.normal(jax.random.PRNGKey(1), (3, 1, 17, 24), jnp.float32)
    out2 = jax.block_until_ready(laplace_op(x2))
    err2 = float(jnp.max(jnp.abs(out2 - _ref_laplace(x2))))
    assert err2 < 1e-4, err2

    # Slightly larger, lane-aligned frame on the same (MXU) path.
    x3 = jax.random.normal(jax.random.PRNGKey(2), (2, 1, 64, 128), jnp.float32)
    out3 = jax.block_until_ready(laplace_op(x3))
    err3 = float(jnp.max(jnp.abs(out3 - _ref_laplace(x3))))
    assert err3 < 1e-4, err3

    # Validate the large-frame (VPU / roll-based) math without a huge frame:
    # pltpu.roll has jnp.roll semantics, so the same helper run with jnp.roll
    # on the host must match the reference bit-for-bit up to f32 rounding.
    x4 = jax.random.normal(jax.random.PRNGKey(3), (2, 1, 40, 56), jnp.float32)
    host = _laplace_separable(x4.reshape(2, 40, 56), jnp.roll).reshape(x4.shape)
    err4 = float(jnp.max(jnp.abs(host - _ref_laplace(x4))))
    assert err4 < 1e-5, err4

    print("KERNEL_OK")
</pallas_src>

<mosaic_0001>
module attributes {stable_mosaic.version = 11 : i64} {
  func.func @_laplace_mxu_kernel(%arg0: i32, %arg1: memref<1x16x16xf32, #tpu.memory_space<vmem>>, %arg2: memref<16x16xf32, #tpu.memory_space<vmem>>, %arg3: memref<16x16xf32, #tpu.memory_space<vmem>>, %arg4: memref<1x16x16xf32, #tpu.memory_space<vmem>>) attributes {dimension_semantics = [#tpu.dimension_semantics<parallel>], iteration_bounds = array<i64: 2>, scalar_prefetch = 0 : i64, scratch_operands = 0 : i64, tpu.core_type = #tpu.core_type<tc>, window_params = [{transform_indices = @transform_0, window_bounds = array<i64: 1, 16, 16>}, {pipeline_mode = #tpu.pipeline_mode<synchronous>, transform_indices = @transform_1, window_bounds = array<i64: 16, 16>}, {pipeline_mode = #tpu.pipeline_mode<synchronous>, transform_indices = @transform_2, window_bounds = array<i64: 16, 16>}, {transform_indices = @transform_3, window_bounds = array<i64: 1, 16, 16>}]} {
    %c0 = arith.constant 0 : index
    %c0_0 = arith.constant 0 : index
    %0 = vector.load %arg2[%c0, %c0_0] : memref<16x16xf32, #tpu.memory_space<vmem>>, vector<16x16xf32>
    %c0_1 = arith.constant 0 : index
    %c0_2 = arith.constant 0 : index
    %1 = vector.load %arg3[%c0_1, %c0_2] : memref<16x16xf32, #tpu.memory_space<vmem>>, vector<16x16xf32>
    %c0_3 = arith.constant 0 : index
    %c0_4 = arith.constant 0 : index
    %c0_5 = arith.constant 0 : index
    %2 = vector.load %arg1[%c0_3, %c0_4, %c0_5] : memref<1x16x16xf32, #tpu.memory_space<vmem>>, vector<1x16x16xf32>
    %3 = vector.shape_cast %2 : vector<1x16x16xf32> to vector<16x16xf32>
    %cst = arith.constant dense<0.000000e+00> : vector<16x16xf32>
    %4 = tpu.matmul %3, %0, %cst {dimension_numbers = #tpu.dot_dimension_numbers<[1], [0], [0], [1], [0, 0, 1, 1], [], []>, precision = #tpu.contract_precision<fp32>} : vector<16x16xf32>, vector<16x16xf32>, vector<16x16xf32> -> vector<16x16xf32>
    %cst_6 = arith.constant dense<0.000000e+00> : vector<16x16xf32>
    %5 = tpu.matmul %1, %4, %cst_6 {dimension_numbers = #tpu.dot_dimension_numbers<[1], [0], [0], [1], [0, 0, 1, 1], [], []>, precision = #tpu.contract_precision<fp32>} : vector<16x16xf32>, vector<16x16xf32>, vector<16x16xf32> -> vector<16x16xf32>
    %6 = arith.subf %3, %5 : vector<16x16xf32>
    %c0_7 = arith.constant 0 : index
    %c0_8 = arith.constant 0 : index
    %c0_9 = arith.constant 0 : index
    %7 = vector.load %arg4[%c0_7, %c0_8, %c0_9] : memref<1x16x16xf32, #tpu.memory_space<vmem>>, vector<1x16x16xf32>
    %8 = vector.shape_cast %7 : vector<1x16x16xf32> to vector<16x16xf32>
    %9 = vector.shape_cast %6 : vector<16x16xf32> to vector<1x16x16xf32>
    tpu.vector_store %arg4[%c0_7, %c0_8, %c0_9], %9 {strides = array<i32>} : memref<1x16x16xf32, #tpu.memory_space<vmem>>, vector<1x16x16xf32>,
    return
  }
  func.func @transform_0(%arg0: i32) -> (i32, i32, i32) {
    %c0_i32 = arith.constant 0 : i32
    %c0_i32_0 = arith.constant 0 : i32
    %c0_i32_1 = arith.constant 0 : i32
    return %arg0, %c0_i32, %c0_i32_0 : i32, i32, i32
  }
  func.func @transform_1(%arg0: i32) -> (i32, i32) {
    %c0_i32 = arith.constant 0 : i32
    %c0_i32_0 = arith.constant 0 : i32
    %c0_i32_1 = arith.constant 0 : i32
    return %c0_i32, %c0_i32_0 : i32, i32
  }
  func.func @transform_2(%arg0: i32) -> (i32, i32) {
    %c0_i32 = arith.constant 0 : i32
    %c0_i32_0 = arith.constant 0 : i32
    %c0_i32_1 = arith.constant 0 : i32
    return %c0_i32, %c0_i32_0 : i32, i32
  }
  func.func @transform_3(%arg0: i32) -> (i32, i32, i32) {
    %c0_i32 = arith.constant 0 : i32
    %c0_i32_0 = arith.constant 0 : i32
    %c0_i32_1 = arith.constant 0 : i32
    return %arg0, %c0_i32, %c0_i32_0 : i32, i32, i32
  }
}

</mosaic_0001>

<llo_original>
// kernel: tpu_custom_call.1
$region0: #{tpu_custom_call.1}
  #allocation0 [shape = 'u32[]', space=smem, size = 0x4, offset = 0x4, fixed_abs, tag = 'smem constant byte address 0x4 - core index']
  #allocation1 [shape = 'u32[144,128]{1,0:T(1,128)}', space=vmem, size = 0x12000, scoped, tag = 'internal scratch']
  %s0 = inlined_call_operand.hbm [shape: f32[2,16,16], index: 0, kind: input, shape index: {}]
  %s1 = inlined_call_operand.hbm [shape: f32[16,16], index: 1, kind: input, shape index: {}]
  %s2 = inlined_call_operand.hbm [shape: f32[16,16], index: 2, kind: input, shape index: {}]
  %s3 = inlined_call_operand.hbm [shape: f32[2,16,16], index: 3, kind: output, shape index: {}]
  %s4 = sld [smem:[#allocation0]]
  $region57: #{tpu_custom_call.1} parent=0
    _
  %s6 = ssub.s32 1, %s4
  %s7 = scalar_select 0, %s6, %s4
  $region1: #{tpu_custom_call.1} parent=0
    #allocation2 [shape = 'u8[16384]{0}', space=vmem, size = 0x4000, scoped, tag = 'input window, operand 0']
    #allocation3 [shape = 's32[2]{0}', space=sflag, size = 0x8, scoped, tag = 'scoped memory for tpu_custom_call.1']
    #allocation4 [shape = 's32[2]{0}', space=sflag, size = 0x8, scoped, tag = 'scoped memory for tpu_custom_call.1']
    #allocation5 [shape = 'u8[8192]{0}', space=vmem, size = 0x2000, scoped, tag = 'input window, operand 1, single buffered']
    #allocation6 [shape = 's32[1]{0}', space=sflag, size = 0x4, scoped, tag = 'scoped memory for tpu_custom_call.1']
    #allocation7 [shape = 'u8[8192]{0}', space=vmem, size = 0x2000, scoped, tag = 'input window, operand 2, single buffered']
    #allocation8 [shape = 'u8[16384]{0}', space=vmem, size = 0x4000, scoped, tag = 'output window, operand 0']
    %8 = vsyncpa [#allocation3], 0
    %s9 = scalar_lea.sflag [#allocation3], 1
    %10 = vsyncpa %s9, 0
    %11 = vsyncpa [#allocation6], 0
    %12 = vsyncpa [#allocation4], 0
    %s13 = scalar_lea.sflag [#allocation4], 1
    %14 = vsyncpa %s13, 0
    loop: start=0, step=1, limit=4
    $region2: #{tpu_custom_call.1} parent=1 // loop_pre_header
      _
    $region3: #{tpu_custom_call.1} parent=1 // loop_header
      %s16 = sphi 0, %s20
      %p17 = scmp.ge.s32.totalorder %s16, 4
      %s26 = sphi 0, %s28
      %s29 = sphi 0, %s26
      %s30 = sphi 0, %s29
      %s46 = sphi 0, %s30
      %s50 = sphi 0, %s50
      %s52 = sphi 0, %s50
      %s53 = sphi 0, %s52
      %s67 = sphi 0, %s53
      %s71 = sphi 0, %s71
      %s73 = sphi 0, %s71
      %s74 = sphi 0, %s73
      %s88 = sphi 0, %s74
      %s94 = sphi 0, %s96
      %s97 = sphi 0, %s94
      %s98 = sphi 0, %s97
      %s114 = sphi 0, %s98
    $region4: #{tpu_custom_call.1} parent=1 // loop_header_branch
      %19 = sbr.rel (%p17) target = $region8
    $region5: #{tpu_custom_call.1} parent=1 // loop_body
      %s21 = ssub.s32 %s16, 1
      %s22 = ssub.s32 %s16, 2
      %s23 = sadd.s32 %s16, 1
      %s24 = ssub.s32 %s16, %s23
      %p25 = scmp.eq.s32.totalorder %s24, 0
      %s27 = sadd.s32 %s26, 1
      %s28 = scalar_select %p25, %s26, %s27
      %p31 = pneg %p25
      %p32 = scmp.eq.s32.totalorder %s16, 1
      %p33 = por %p31, %p32
      %p34 = scmp.ne.s32.totalorder %s26, %s29
      %p35 = scmp.eq.s32.totalorder %s16, 0
      %p36 = por %p34, %p35
      %p37 = scmp.ne.s32.totalorder %s26, %s29
      %p38 = scmp.eq.s32.totalorder %s21, 1
      %p39 = por %p37, %p38
      %p40 = scmp.ne.s32.totalorder %s29, %s30
      %p41 = scmp.eq.s32.totalorder %s21, 0
      %p42 = por %p40, %p41
      %p43 = scmp.ne.s32.totalorder %s29, %s30
      %p44 = scmp.eq.s32.totalorder %s22, 1
      %p45 = por %p43, %p44
      %p47 = scmp.ne.s32.totalorder %s30, %s46
      %p48 = scmp.eq.s32.totalorder %s22, 0
      %p49 = por %p47, %p48
      %s51 = sadd.s32 %s50, 1
      %p54 = scmp.eq.s32.totalorder %s16, 1
      %p55 = scmp.ne.s32.totalorder %s50, %s52
      %p56 = scmp.eq.s32.totalorder %s16, 0
      %p57 = por %p55, %p56
      %p58 = scmp.ne.s32.totalorder %s50, %s52
      %p59 = scmp.eq.s32.totalorder %s21, 1
      %p60 = por %p58, %p59
      %p61 = scmp.ne.s32.totalorder %s52, %s53
      %p62 = scmp.eq.s32.totalorder %s21, 0
      %p63 = por %p61, %p62
      %p64 = scmp.ne.s32.totalorder %s52, %s53
      %p65 = scmp.eq.s32.totalorder %s22, 1
      %p66 = por %p64, %p65
      %p68 = scmp.ne.s32.totalorder %s53, %s67
      %p69 = scmp.eq.s32.totalorder %s22, 0
      %p70 = por %p68, %p69
      %s72 = sadd.s32 %s71, 1
      %p75 = scmp.eq.s32.totalorder %s16, 1
      %p76 = scmp.ne.s32.totalorder %s71, %s73
      %p77 = scmp.eq.s32.totalorder %s16, 0
      %p78 = por %p76, %p77
      %p79 = scmp.ne.s32.totalorder %s71, %s73
      %p80 = scmp.eq.s32.totalorder %s21, 1
      %p81 = por %p79, %p80
      %p82 = scmp.ne.s32.totalorder %s73, %s74
      %p83 = scmp.eq.s32.totalorder %s21, 0
      %p84 = por %p82, %p83
      %p85 = scmp.ne.s32.totalorder %s73, %s74
      %p86 = scmp.eq.s32.totalorder %s22, 1
      %p87 = por %p85, %p86
      %p89 = scmp.ne.s32.totalorder %s74, %s88
      %p90 = scmp.eq.s32.totalorder %s22, 0
      %p91 = por %p89, %p90
      %s92 = ssub.s32 %s16, %s23
      %p93 = scmp.eq.s32.totalorder %s92, 0
      %s95 = sadd.s32 %s94, 1
      %s96 = scalar_select %p93, %s94, %s95
      %p99 = pneg %p93
      %p100 = scmp.eq.s32.totalorder %s16, 1
      %p101 = por %p99, %p100
      %p102 = scmp.ne.s32.totalorder %s94, %s97
      %p103 = scmp.eq.s32.totalorder %s16, 0
      %p104 = por %p102, %p103
      %p105 = scmp.ne.s32.totalorder %s94, %s97
      %p106 = scmp.eq.s32.totalorder %s21, 1
      %p107 = por %p105, %p106
      %p108 = scmp.ne.s32.totalorder %s97, %s98
      %p109 = scmp.eq.s32.totalorder %s21, 0
      %p110 = por %p108, %p109
      %p111 = scmp.ne.s32.totalorder %s97, %s98
      %p112 = scmp.eq.s32.totalorder %s22, 1
      %p113 = por %p111, %p112
      %p115 = scmp.ne.s32.totalorder %s98, %s114
      %p116 = scmp.eq.s32.totalorder %s22, 0
      %p117 = por %p115, %p116
      %p118 = scmp.le.s32.totalorder 1, %s16
      %p119 = scmp.lt.s32.totalorder %s16, 3
      %p120 = pnand %p118, %p119
      %p121 = pneg %p120
      // Predicated region
      $region9: #{tpu_custom_call.1} parent=5 // pred_check
        _
      $region10: #{tpu_custom_call.1} parent=5 // pred_check_branch
        %123 = sbr.rel (%p120) target = $region12
      $region11: #{tpu_custom_call.1} parent=5 // pred_region
        %s124 = ssub.s32 %s16, 1
        // Predicated region
        $region13: #{tpu_custom_call.1} parent=11 // pred_check
          %p125 = pneg %p63
        $region14: #{tpu_custom_call.1} parent=11 // pred_check_branch
          %127 = sbr.rel (%p125) target = $region16
        $region15: #{tpu_custom_call.1} parent=11 // pred_region
          %s129 = ssub.s32 256, 256
          %130 = vsyncadd [#allocation6], %s129
          %s131 = sshll.u32 [#allocation5], 4
          %s132 = int_to_ptr.vmem [resolvable:$true] %s131
          %137 = dma.hbm_to_vmem [thread:$0]  %s1, 256, %s132, [#allocation6], 128, 128, 8
        $region16: #{tpu_custom_call.1} parent=11 // pred_fallthru
          _
        // Predicated region
        $region17: #{tpu_custom_call.1} parent=11 // pred_check
          %p138 = pneg %p84
        $region18: #{tpu_custom_call.1} parent=11 // pred_check_branch
          %140 = sbr.rel (%p138) target = $region20
        $region19: #{tpu_custom_call.1} parent=11 // pred_region
          %s142 = ssub.s32 256, 256
          %143 = vsyncadd [#allocation6], %s142
          %s144 = sshll.u32 [#allocation7], 4
          %s145 = int_to_ptr.vmem [resolvable:$true] %s144
          %150 = dma.hbm_to_vmem [thread:$0]  %s2, 256, %s145, [#allocation6], 128, 128, 8
        $region20: #{tpu_custom_call.1} parent=11 // pred_fallthru
          _
      $region12: #{tpu_custom_call.1} parent=5 // pred_fallthru
        _
      %p151 = scmp.lt.s32.totalorder %s16, 2
      // Predicated region
      $region21: #{tpu_custom_call.1} parent=5 // pred_check
        %p152 = pneg %p151
      $region22: #{tpu_custom_call.1} parent=5 // pred_check_branch
        %154 = sbr.rel (%p152) target = $region24
      $region23: #{tpu_custom_call.1} parent=5 // pred_region
        // Predicated region
        $region25: #{tpu_custom_call.1} parent=23 // pred_check
          %p155 = pneg %p36
        $region26: #{tpu_custom_call.1} parent=23 // pred_check_branch
          %157 = sbr.rel (%p155) target = $region28
        $region27: #{tpu_custom_call.1} parent=23 // pred_region
          %s158 = sand.u32 %s26, 1
          %s159 = scalar_lea.sflag [#allocation3], %s158
          %s160 = sand.u32 %s26, 1
          %s161 = smul.addr %s160, 16
          %s162 = scalar_lea.vmem [#allocation2], %s161
          %s164 = ssub.s32 256, 256
          %165 = vsyncadd %s159, %s164
          %s166 = smul.addr %s16, 2
          %s167 = smul.addr %s166, 128
          %s168 = scalar_lea.hbm %s0, %s167
          %s169 = sshll.u32 %s162, 4
          %s170 = int_to_ptr.vmem [resolvable:$true] %s169
          %175 = dma.hbm_to_vmem [thread:$0]  %s168, 256, %s170, %s159, 128, 128, 8
        $region28: #{tpu_custom_call.1} parent=23 // pred_fallthru
          _
      $region24: #{tpu_custom_call.1} parent=5 // pred_fallthru
        _
      %p176 = scmp.le.s32.totalorder 1, %s16
      %p177 = scmp.lt.s32.totalorder %s16, 3
      %p178 = pnand %p176, %p177
      %p179 = pneg %p178
      // Predicated region
      $region29: #{tpu_custom_call.1} parent=5 // pred_check
        _
      $region30: #{tpu_custom_call.1} parent=5 // pred_check_branch
        %181 = sbr.rel (%p178) target = $region32
      $region31: #{tpu_custom_call.1} parent=5 // pred_region
        %s182 = ssub.s32 %s16, 1
        %s183 = sand.u32 %s29, 1
        %s184 = scalar_lea.sflag [#allocation3], %s183
        %s185 = sand.u32 %s29, 1
        %s186 = smul.addr %s185, 16
        %s187 = scalar_lea.vmem [#allocation2], %s186
        // Predicated region
        $region33: #{tpu_custom_call.1} parent=31 // pred_check
          %p188 = pneg %p42
        $region34: #{tpu_custom_call.1} parent=31 // pred_check_branch
          %190 = sbr.rel (%p188) target = $region36
        $region35: #{tpu_custom_call.1} parent=31 // pred_region
          %191 = dma.done %s184, 256
        $region36: #{tpu_custom_call.1} parent=31 // pred_fallthru
          _
        // Predicated region
        $region37: #{tpu_custom_call.1} parent=31 // pred_check
          %p192 = pneg %p63
        $region38: #{tpu_custom_call.1} parent=31 // pred_check_branch
          %194 = sbr.rel (%p192) target = $region40
        $region39: #{tpu_custom_call.1} parent=31 // pred_region
          %195 = dma.done [#allocation6], 256
        $region40: #{tpu_custom_call.1} parent=31 // pred_fallthru
          _
        // Predicated region
        $region41: #{tpu_custom_call.1} parent=31 // pred_check
          %p196 = pneg %p84
        $region42: #{tpu_custom_call.1} parent=31 // pred_check_branch
          %198 = sbr.rel (%p196) target = $region44
        $region43: #{tpu_custom_call.1} parent=31 // pred_region
          %199 = dma.done [#allocation6], 256
        $region44: #{tpu_custom_call.1} parent=31 // pred_fallthru
          _
        %s200 = sand.u32 %s29, 1
        %s201 = scalar_lea.sflag [#allocation3], %s200
        %s202 = sand.u32 %s29, 1
        %s203 = smul.addr %s202, 16
        %s204 = scalar_lea.vmem [#allocation2], %s203
        %p205 = pneg %p42
        %p206 = pneg %p39
        %p207 = pneg %p63
        %p208 = pneg %p60
        %p209 = pneg %p84
        %p210 = pneg %p81
        %p211 = pneg %p110
        %p212 = pneg %p107
        %s213 = sand.u32 %s97, 1
        %s214 = scalar_lea.sflag [#allocation4], %s213
        %s215 = sand.u32 %s97, 1
        %s216 = smul.addr %s215, 16
        %s217 = scalar_lea.vmem [#allocation8], %s216
        %v218 = vld [vmem:[#allocation5] sm:$0xff]
        %v219 = vld [vmem:[#allocation5 + $0x8] sm:$0xff]
        %v220 = vld [vmem:[#allocation7] sm:$0xff]
        %v221 = vld [vmem:[#allocation7 + $0x8] sm:$0xff]
        %v222 = vld [vmem:[%s187] sm:$0xff]
        %v223 = vld [vmem:[%s187 + $0x8] sm:$0xff]
        %vm224 = vcmask 130048
        %v226 = vsel %vm224, %v222, 0
        %v229 = vsel %vm224, %v223, 0
        %231 = vmatprep.subr.mxu0 0.0
        %v232 = vand.u32 %v218, 4294901760
        %233 = vmatpush1.msra.mxu0 %v232
        %234 = vmatprep.subr.mxu0 0.0
        %v235 = vand.u32 %v219, 4294901760
        %236 = vmatpush1.msra.mxu0 %v235
        %237 = vmatprep.subr.mxu0 0.0
        %238 = vmatpush1.msra.mxu0 0.0
        %239 = vmatprep.subr.mxu0 0.0
        %240 = vmatpush1.msra.mxu0 0.0
        %241 = vmatprep.subr.mxu0 0.0
        %242 = vmatpush1.msra.mxu0 0.0
        %243 = vmatprep.subr.mxu0 0.0
        %244 = vmatpush1.msra.mxu0 0.0
        %245 = vmatprep.subr.mxu0 0.0
        %246 = vmatpush1.msra.mxu0 0.0
        %247 = vmatprep.subr.mxu0 0.0
        %248 = vmatpush1.msra.mxu0 0.0
        %249 = vmatprep.subr.mxu0 0.0
        %250 = vmatpush1.msra.mxu0 0.0
        %251 = vmatprep.subr.mxu0 0.0
        %252 = vmatpush1.msra.mxu0 0.0
        %253 = vmatprep.subr.mxu0 0.0
        %254 = vmatpush1.msra.mxu0 0.0
        %255 = vmatprep.subr.mxu0 0.0
        %256 = vmatpush1.msra.mxu0 0.0
        %257 = vmatprep.subr.mxu0 0.0
        %258 = vmatpush1.msra.mxu0 0.0
        %259 = vmatprep.subr.mxu0 0.0
        %260 = vmatpush1.msra.mxu0 0.0
        %261 = vmatprep.subr.mxu0 0.0
        %262 = vmatpush1.msra.mxu0 0.0
        %263 = vmatprep.subr.mxu0 0.0
        %264 = vmatpush1.msra.mxu0 0.0
        %265 = vmatprep.subr.mxu0 0.0
        %266 = vmatpush1.msra.mxu0 0.0
        %267 = vmatprep.subr.mxu0 0.0
        %268 = vmatpush1.msra.mxu0 0.0
        %269 = vmatprep.subr.mxu0 0.0
        %270 = vmatpush1.msra.mxu0 0.0
        %271 = vmatprep.subr.mxu0 0.0
        %272 = vmatpush1.msra.mxu0 0.0
        %273 = vmatprep.subr.mxu0 0.0
        %274 = vmatpush1.msra.mxu0 0.0
        %275 = vmatprep.subr.mxu0 0.0
        %276 = vmatpush1.msra.mxu0 0.0
        %277 = vmatprep.subr.mxu0 0.0
        %278 = vmatpush1.msra.mxu0 0.0
        %279 = vmatprep.subr.mxu0 0.0
        %280 = vmatpush1.msra.mxu0 0.0
        %281 = vmatprep.subr.mxu0 0.0
        %282 = vmatpush1.msra.mxu0 0.0
        %283 = vmatprep.subr.mxu0 0.0
        %284 = vmatpush1.msra.mxu0 0.0
        %285 = vmatprep.subr.mxu0 0.0
        %286 = vmatpush1.msra.mxu0 0.0
        %287 = vmatprep.subr.mxu0 0.0
        %288 = vmatpush1.msra.mxu0 0.0
        %289 = vmatprep.subr.mxu0 0.0
        %290 = vmatpush1.msra.mxu0 0.0
        %291 = vmatprep.subr.mxu0 0.0
        %292 = vmatpush1.msra.mxu0 0.0
        %293 = vmatprep.subr.mxu0 0.0
        %294 = vmatpush1.msra.mxu0 0.0
        %295 = vmatprep.subr.mxu0 0.0
        %296 = vmatpush1.msra.mxu0 0.0
        %297 = vmatprep.mubr.f32.mxu0 0.0
        %v298 = vand.u32 %v226, 4294901760
        %v299 = vsub.f32 %v226, %v298
        %v300 = vand.u32 %v299, 4294901760
        %v301 = vsub.f32 %v299, %v300
        %v302 = vand.u32 %v301, 4294901760
        %303 = vmatmul.mubr.f32.gmra.mrb[0].mxu0 %v302
        %v304 = vpop.f32.mrb[0].mxu0
        %v305 = vadd.f32 0.0, %v304
        %v306 = vpop.f32.mrb[0].mxu0
        %307 = vmatprep.mubr.f32.mxu0 0.0
        %v308 = vand.u32 %v229, 4294901760
        %v309 = vsub.f32 %v229, %v308
        %v310 = vand.u32 %v309, 4294901760
        %v311 = vsub.f32 %v309, %v310
        %v312 = vand.u32 %v311, 4294901760
        %313 = vmatmul.mubr.f32.gmra.mrb[0].mxu0 %v312
        %v314 = vpop.f32.mrb[0].mxu0
        %v315 = vadd.f32 0.0, %v314
        %v316 = vpop.f32.mrb[0].mxu0
        %317 = vdwg.mxu0
        %318 = vmatprep.subr.mxu0 0.0
        %v319 = vand.u32 %v218, 4294901760
        %v320 = vsub.f32 %v218, %v319
        %v321 = vand.u32 %v320, 4294901760
        %v322 = vsub.f32 %v320, %v321
        %v323 = vand.u32 %v322, 4294901760
        %324 = vmatpush1.msra.mxu0 %v323
        %325 = vmatprep.subr.mxu0 0.0
        %v326 = vand.u32 %v219, 4294901760
        %v327 = vsub.f32 %v219, %v326
        %v328 = vand.u32 %v327, 4294901760
        %v329 = vsub.f32 %v327, %v328
        %v330 = vand.u32 %v329, 4294901760
        %331 = vmatpush1.msra.mxu0 %v330
        %332 = vmatprep.subr.mxu0 0.0
        %333 = vmatpush1.msra.mxu0 0.0
        %334 = vmatprep.subr.mxu0 0.0
        %335 = vmatpush1.msra.mxu0 0.0
        %336 = vmatprep.subr.mxu0 0.0
        %337 = vmatpush1.msra.mxu0 0.0
        %338 = vmatprep.subr.mxu0 0.0
        %339 = vmatpush1.msra.mxu0 0.0
        %340 = vmatprep.subr.mxu0 0.0
        %341 = vmatpush1.msra.mxu0 0.0
        %342 = vmatprep.subr.mxu0 0.0
        %343 = vmatpush1.msra.mxu0 0.0
        %344 = vmatprep.subr.mxu0 0.0
        %345 = vmatpush1.msra.mxu0 0.0
        %346 = vmatprep.subr.mxu0 0.0
        %347 = vmatpush1.msra.mxu0 0.0
        %348 = vmatprep.subr.mxu0 0.0
        %349 = vmatpush1.msra.mxu0 0.0
        %350 = vmatprep.subr.mxu0 0.0
        %351 = vmatpush1.msra.mxu0 0.0
        %352 = vmatprep.subr.mxu0 0.0
        %353 = vmatpush1.msra.mxu0 0.0
        %354 = vmatprep.subr.mxu0 0.0
        %355 = vmatpush1.msra.mxu0 0.0
        %356 = vmatprep.subr.mxu0 0.0
        %357 = vmatpush1.msra.mxu0 0.0
        %358 = vmatprep.subr.mxu0 0.0
        %359 = vmatpush1.msra.mxu0 0.0
        %360 = vmatprep.subr.mxu0 0.0
        %361 = vmatpush1.msra.mxu0 0.0
        %362 = vmatprep.subr.mxu0 0.0
        %363 = vmatpush1.msra.mxu0 0.0
        %364 = vmatprep.subr.mxu0 0.0
        %365 = vmatpush1.msra.mxu0 0.0
        %366 = vmatprep.subr.mxu0 0.0
        %367 = vmatpush1.msra.mxu0 0.0
        %368 = vmatprep.subr.mxu0 0.0
        %369 = vmatpush1.msra.mxu0 0.0
        %370 = vmatprep.subr.mxu0 0.0
        %371 = vmatpush1.msra.mxu0 0.0
        %372 = vmatprep.subr.mxu0 0.0
        %373 = vmatpush1.msra.mxu0 0.0
        %374 = vmatprep.subr.mxu0 0.0
        %375 = vmatpush1.msra.mxu0 0.0
        %376 = vmatprep.subr.mxu0 0.0
        %377 = vmatpush1.msra.mxu0 0.0
        %378 = vmatprep.subr.mxu0 0.0
        %379 = vmatpush1.msra.mxu0 0.0
        %380 = vmatprep.subr.mxu0 0.0
        %381 = vmatpush1.msra.mxu0 0.0
        %382 = vmatprep.subr.mxu0 0.0
        %383 = vmatpush1.msra.mxu0 0.0
        %384 = vmatprep.subr.mxu0 0.0
        %385 = vmatpush1.msra.mxu0 0.0
        %386 = vmatprep.subr.mxu0 0.0
        %387 = vmatpush1.msra.mxu0 0.0
        %388 = vmatprep.subr.mxu0 0.0
        %389 = vmatpush1.msra.mxu0 0.0
        %390 = vmatprep.subr.mxu0 0.0
        %391 = vmatpush1.msra.mxu0 0.0
        %392 = vmatprep.mubr.f32.mxu0 0.0
        %v393 = vand.u32 %v226, 4294901760
        %394 = vmatmul.mubr.f32.gmra.mrb[0].mxu0 %v393
        %v395 = vpop.f32.mrb[0].mxu0
        %v396 = vadd.f32 %v305, %v395
        %v397 = vpop.f32.mrb[0].mxu0
        %398 = vmatprep.mubr.f32.mxu0 0.0
        %v399 = vand.u32 %v229, 4294901760
        %400 = vmatmul.mubr.f32.gmra.mrb[0].mxu0 %v399
        %v401 = vpop.f32.mrb[0].mxu0
        %v402 = vadd.f32 %v315, %v401
        %v403 = vpop.f32.mrb[0].mxu0
        %404 = vdwg.mxu0
        %405 = vmatprep.subr.mxu0 0.0
        %v406 = vand.u32 %v218, 4294901760
        %v407 = vsub.f32 %v218, %v406
        %408 = vmatpush1.msra.mxu0 %v407
        %409 = vmatprep.subr.mxu0 0.0
        %v410 = vand.u32 %v219, 4294901760
        %v411 = vsub.f32 %v219, %v410
        %412 = vmatpush1.msra.mxu0 %v411
        %413 = vmatprep.subr.mxu0 0.0
        %414 = vmatpush1.msra.mxu0 0.0
        %415 = vmatprep.subr.mxu0 0.0
        %416 = vmatpush1.msra.mxu0 0.0
        %417 = vmatprep.subr.mxu0 0.0
        %418 = vmatpush1.msra.mxu0 0.0
        %419 = vmatprep.subr.mxu0 0.0
        %420 = vmatpush1.msra.mxu0 0.0
        %421 = vmatprep.subr.mxu0 0.0
        %422 = vmatpush1.msra.mxu0 0.0
        %423 = vmatprep.subr.mxu0 0.0
        %424 = vmatpush1.msra.mxu0 0.0
        %425 = vmatprep.subr.mxu0 0.0
        %426 = vmatpush1.msra.mxu0 0.0
        %427 = vmatprep.subr.mxu0 0.0
        %428 = vmatpush1.msra.mxu0 0.0
        %429 = vmatprep.subr.mxu0 0.0
        %430 = vmatpush1.msra.mxu0 0.0
        %431 = vmatprep.subr.mxu0 0.0
        %432 = vmatpush1.msra.mxu0 0.0
        %433 = vmatprep.subr.mxu0 0.0
        %434 = vmatpush1.msra.mxu0 0.0
        %435 = vmatprep.subr.mxu0 0.0
        %436 = vmatpush1.msra.mxu0 0.0
        %437 = vmatprep.subr.mxu0 0.0
        %438 = vmatpush1.msra.mxu0 0.0
        %439 = vmatprep.subr.mxu0 0.0
        %440 = vmatpush1.msra.mxu0 0.0
        %441 = vmatprep.subr.mxu0 0.0
        %442 = vmatpush1.msra.mxu0 0.0
        %443 = vmatprep.subr.mxu0 0.0
        %444 = vmatpush1.msra.mxu0 0.0
        %445 = vmatprep.subr.mxu0 0.0
        %446 = vmatpush1.msra.mxu0 0.0
        %447 = vmatprep.subr.mxu0 0.0
        %448 = vmatpush1.msra.mxu0 0.0
        %449 = vmatprep.subr.mxu0 0.0
        %450 = vmatpush1.msra.mxu0 0.0
        %451 = vmatprep.subr.mxu0 0.0
        %452 = vmatpush1.msra.mxu0 0.0
        %453 = vmatprep.subr.mxu0 0.0
        %454 = vmatpush1.msra.mxu0 0.0
        %455 = vmatprep.subr.mxu0 0.0
        %456 = vmatpush1.msra.mxu0 0.0
        %457 = vmatprep.subr.mxu0 0.0
        %458 = vmatpush1.msra.mxu0 0.0
        %459 = vmatprep.subr.mxu0 0.0
        %460 = vmatpush1.msra.mxu0 0.0
        %461 = vmatprep.subr.mxu0 0.0
        %462 = vmatpush1.msra.mxu0 0.0
        %463 = vmatprep.subr.mxu0 0.0
        %464 = vmatpush1.msra.mxu0 0.0
        %465 = vmatprep.subr.mxu0 0.0
        %466 = vmatpush1.msra.mxu0 0.0
        %467 = vmatprep.subr.mxu0 0.0
        %468 = vmatpush1.msra.mxu0 0.0
        %469 = vmatprep.subr.mxu0 0.0
        %470 = vmatpush1.msra.mxu0 0.0
        %471 = vmatprep.subr.mxu0 0.0
        %472 = vmatpush1.msra.mxu0 0.0
        %473 = vmatprep.mubr.f32.mxu0 0.0
        %v474 = vand.u32 %v226, 4294901760
        %v475 = vsub.f32 %v226, %v474
        %476 = vmatmul.mubr.f32.gmra.mrb[0].mxu0 %v475
        %v477 = vpop.f32.mrb[0].mxu0
        %v478 = vadd.f32 %v396, %v477
        %v479 = vpop.f32.mrb[0].mxu0
        %480 = vmatprep.mubr.f32.mxu0 0.0
        %v481 = vand.u32 %v229, 4294901760
        %v482 = vsub.f32 %v229, %v481
        %483 = vmatmul.mubr.f32.gmra.mrb[0].mxu0 %v482
        %v484 = vpop.f32.mrb[0].mxu0
        %v485 = vadd.f32 %v402, %v484
        %v486 = vpop.f32.mrb[0].mxu0
        %487 = vdwg.mxu0
        %488 = vmatprep.subr.mxu0 0.0
        %v489 = vand.u32 %v218, 4294901760
        %490 = vmatpush1.msra.mxu0 %v489
        %491 = vmatprep.subr.mxu0 0.0
        %v492 = vand.u32 %v219, 4294901760
        %493 = vmatpush1.msra.mxu0 %v492
        %494 = vmatprep.subr.mxu0 0.0
        %495 = vmatpush1.msra.mxu0 0.0
        %496 = vmatprep.subr.mxu0 0.0
        %497 = vmatpush1.msra.mxu0 0.0
        %498 = vmatprep.subr.mxu0 0.0
        %499 = vmatpush1.msra.mxu0 0.0
        %500 = vmatprep.subr.mxu0 0.0
        %501 = vmatpush1.msra.mxu0 0.0
        %502 = vmatprep.subr.mxu0 0.0
        %503 = vmatpush1.msra.mxu0 0.0
        %504 = vmatprep.subr.mxu0 0.0
        %505 = vmatpush1.msra.mxu0 0.0
        %506 = vmatprep.subr.mxu0 0.0
        %507 = vmatpush1.msra.mxu0 0.0
        %508 = vmatprep.subr.mxu0 0.0
        %509 = vmatpush1.msra.mxu0 0.0
        %510 = vmatprep.subr.mxu0 0.0
        %511 = vmatpush1.msra.mxu0 0.0
        %512 = vmatprep.subr.mxu0 0.0
        %513 = vmatpush1.msra.mxu0 0.0
        %514 = vmatprep.subr.mxu0 0.0
        %515 = vmatpush1.msra.mxu0 0.0
        %516 = vmatprep.subr.mxu0 0.0
        %517 = vmatpush1.msra.mxu0 0.0
        %518 = vmatprep.subr.mxu0 0.0
        %519 = vmatpush1.msra.mxu0 0.0
        %520 = vmatprep.subr.mxu0 0.0
        %521 = vmatpush1.msra.mxu0 0.0
        %522 = vmatprep.subr.mxu0 0.0
        %523 = vmatpush1.msra.mxu0 0.0
        %524 = vmatprep.subr.mxu0 0.0
        %525 = vmatpush1.msra.mxu0 0.0
        %526 = vmatprep.subr.mxu0 0.0
        %527 = vmatpush1.msra.mxu0 0.0
        %528 = vmatprep.subr.mxu0 0.0
        %529 = vmatpush1.msra.mxu0 0.0
        %530 = vmatprep.subr.mxu0 0.0
        %531 = vmatpush1.msra.mxu0 0.0
        %532 = vmatprep.subr.mxu0 0.0
        %533 = vmatpush1.msra.mxu0 0.0
        %534 = vmatprep.subr.mxu0 0.0
        %535 = vmatpush1.msra.mxu0 0.0
        %536 = vmatprep.subr.mxu0 0.0
        %537 = vmatpush1.msra.mxu0 0.0
        %538 = vmatprep.subr.mxu0 0.0
        %539 = vmatpush1.msra.mxu0 0.0
        %540 = vmatprep.subr.mxu0 0.0
        %541 = vmatpush1.msra.mxu0 0.0
        %542 = vmatprep.subr.mxu0 0.0
        %543 = vmatpush1.msra.mxu0 0.0
        %544 = vmatprep.subr.mxu0 0.0
        %545 = vmatpush1.msra.mxu0 0.0
        %546 = vmatprep.subr.mxu0 0.0
        %547 = vmatpush1.msra.mxu0 0.0
        %548 = vmatprep.subr.mxu0 0.0
        %549 = vmatpush1.msra.mxu0 0.0
        %550 = vmatprep.subr.mxu0 0.0
        %551 = vmatpush1.msra.mxu0 0.0
        %552 = vmatprep.subr.mxu0 0.0
        %553 = vmatpush1.msra.mxu0 0.0
        %554 = vmatprep.mubr.f32.mxu0 0.0
        %v555 = vand.u32 %v226, 4294901760
        %v556 = vsub.f32 %v226, %v555
        %v557 = vand.u32 %v556, 4294901760
        %558 = vmatmul.mubr.f32.gmra.mrb[0].mxu0 %v557
        %v559 = vpop.f32.mrb[0].mxu0
        %v560 = vadd.f32 %v478, %v559
        %v561 = vpop.f32.mrb[0].mxu0
        %562 = vmatprep.mubr.f32.mxu0 0.0
        %v563 = vand.u32 %v229, 4294901760
        %v564 = vsub.f32 %v229, %v563
        %v565 = vand.u32 %v564, 4294901760
        %566 = vmatmul.mubr.f32.gmra.mrb[0].mxu0 %v565
        %v567 = vpop.f32.mrb[0].mxu0
        %v568 = vadd.f32 %v485, %v567
        %v569 = vpop.f32.mrb[0].mxu0
        %570 = vdwg.mxu0
        %571 = vmatprep.subr.mxu0 0.0
        %v572 = vand.u32 %v218, 4294901760
        %v573 = vsub.f32 %v218, %v572
        %v574 = vand.u32 %v573, 4294901760
        %575 = vmatpush1.msra.mxu0 %v574
        %576 = vmatprep.subr.mxu0 0.0
        %v577 = vand.u32 %v219, 4294901760
        %v578 = vsub.f32 %v219, %v577
        %v579 = vand.u32 %v578, 4294901760
        %580 = vmatpush1.msra.mxu0 %v579
        %581 = vmatprep.subr.mxu0 0.0
        %582 = vmatpush1.msra.mxu0 0.0
        %583 = vmatprep.subr.mxu0 0.0
        %584 = vmatpush1.msra.mxu0 0.0
        %585 = vmatprep.subr.mxu0 0.0
        %586 = vmatpush1.msra.mxu0 0.0
        %587 = vmatprep.subr.mxu0 0.0
        %588 = vmatpush1.msra.mxu0 0.0
        %589 = vmatprep.subr.mxu0 0.0
        %590 = vmatpush1.msra.mxu0 0.0
        %591 = vmatprep.subr.mxu0 0.0
        %592 = vmatpush1.msra.mxu0 0.0
        %593 = vmatprep.subr.mxu0 0.0
        %594 = vmatpush1.msra.mxu0 0.0
        %595 = vmatprep.subr.mxu0 0.0
        %596 = vmatpush1.msra.mxu0 0.0
        %597 = vmatprep.subr.mxu0 0.0
        %598 = vmatpush1.msra.mxu0 0.0
        %599 = vmatprep.subr.mxu0 0.0
        %600 = vmatpush1.msra.mxu0 0.0
        %601 = vmatprep.subr.mxu0 0.0
        %602 = vmatpush1.msra.mxu0 0.0
        %603 = vmatprep.subr.mxu0 0.0
        %604 = vmatpush1.msra.mxu0 0.0
        %605 = vmatprep.subr.mxu0 0.0
        %606 = vmatpush1.msra.mxu0 0.0
        %607 = vmatprep.subr.mxu0 0.0
        %608 = vmatpush1.msra.mxu0 0.0
        %609 = vmatprep.subr.mxu0 0.0
        %610 = vmatpush1.msra.mxu0 0.0
        %611 = vmatprep.subr.mxu0 0.0
        %612 = vmatpush1.msra.mxu0 0.0
        %613 = vmatprep.subr.mxu0 0.0
        %614 = vmatpush1.msra.mxu0 0.0
        %615 = vmatprep.subr.mxu0 0.0
        %616 = vmatpush1.msra.mxu0 0.0
        %617 = vmatprep.subr.mxu0 0.0
        %618 = vmatpush1.msra.mxu0 0.0
        %619 = vmatprep.subr.mxu0 0.0
        %620 = vmatpush1.msra.mxu0 0.0
        %621 = vmatprep.subr.mxu0 0.0
        %622 = vmatpush1.msra.mxu0 0.0
        %623 = vmatprep.subr.mxu0 0.0
        %624 = vmatpush1.msra.mxu0 0.0
        %625 = vmatprep.subr.mxu0 0.0
        %626 = vmatpush1.msra.mxu0 0.0
        %627 = vmatprep.subr.mxu0 0.0
        %628 = vmatpush1.msra.mxu0 0.0
        %629 = vmatprep.subr.mxu0 0.0
        %630 = vmatpush1.msra.mxu0 0.0
        %631 = vmatprep.subr.mxu0 0.0
        %632 = vmatpush1.msra.mxu0 0.0
        %633 = vmatprep.subr.mxu0 0.0
        %634 = vmatpush1.msra.mxu0 0.0
        %635 = vmatprep.subr.mxu0 0.0
        %636 = vmatpush1.msra.mxu0 0.0
        %637 = vmatprep.subr.mxu0 0.0
        %638 = vmatpush1.msra.mxu0 0.0
        %639 = vmatprep.subr.mxu0 0.0
        %640 = vmatpush1.msra.mxu0 0.0
        %641 = vmatprep.mubr.f32.mxu0 0.0
        %v642 = vand.u32 %v226, 4294901760
        %643 = vmatmul.mubr.f32.gmra.mrb[0].mxu0 %v642
        %v644 = vpop.f32.mrb[0].mxu0
        %v645 = vadd.f32 %v560, %v644
        %v646 = vpop.f32.mrb[0].mxu0
        %647 = vmatprep.mubr.f32.mxu0 0.0
        %v648 = vand.u32 %v229, 4294901760
        %649 = vmatmul.mubr.f32.gmra.mrb[0].mxu0 %v648
        %v650 = vpop.f32.mrb[0].mxu0
        %v651 = vadd.f32 %v568, %v650
        %v652 = vpop.f32.mrb[0].mxu0
        %653 = vdwg.mxu0
        %654 = vmatprep.subr.mxu0 0.0
        %v655 = vand.u32 %v218, 4294901760
        %656 = vmatpush1.msra.mxu0 %v655
        %657 = vmatprep.subr.mxu0 0.0
        %v658 = vand.u32 %v219, 4294901760
        %659 = vmatpush1.msra.mxu0 %v658
        %660 = vmatprep.subr.mxu0 0.0
        %661 = vmatpush1.msra.mxu0 0.0
        %662 = vmatprep.subr.mxu0 0.0
        %663 = vmatpush1.msra.mxu0 0.0
        %664 = vmatprep.subr.mxu0 0.0
        %665 = vmatpush1.msra.mxu0 0.0
        %666 = vmatprep.subr.mxu0 0.0
        %667 = vmatpush1.msra.mxu0 0.0
        %668 = vmatprep.subr.mxu0 0.0
        %669 = vmatpush1.msra.mxu0 0.0
        %670 = vmatprep.subr.mxu0 0.0
        %671 = vmatpush1.msra.mxu0 0.0
        %672 = vmatprep.subr.mxu0 0.0
        %673 = vmatpush1.msra.mxu0 0.0
        %674 = vmatprep.subr.mxu0 0.0
        %675 = vmatpush1.msra.mxu0 0.0
        %676 = vmatprep.subr.mxu0 0.0
        %677 = vmatpush1.msra.mxu0 0.0
        %678 = vmatprep.subr.mxu0 0.0
        %679 = vmatpush1.msra.mxu0 0.0
        %680 = vmatprep.subr.mxu0 0.0
        %681 = vmatpush1.msra.mxu0 0.0
        %682 = vmatprep.subr.mxu0 0.0
        %683 = vmatpush1.msra.mxu0 0.0
        %684 = vmatprep.subr.mxu0 0.0
        %685 = vmatpush1.msra.mxu0 0.0
        %686 = vmatprep.subr.mxu0 0.0
        %687 = vmatpush1.msra.mxu0 0.0
        %688 = vmatprep.subr.mxu0 0.0
        %689 = vmatpush1.msra.mxu0 0.0
        %690 = vmatprep.subr.mxu0 0.0
        %691 = vmatpush1.msra.mxu0 0.0
        %692 = vmatprep.subr.mxu0 0.0
        %693 = vmatpush1.msra.mxu0 0.0
        %694 = vmatprep.subr.mxu0 0.0
        %695 = vmatpush1.msra.mxu0 0.0
        %696 = vmatprep.subr.mxu0 0.0
        %697 = vmatpush1.msra.mxu0 0.0
        %698 = vmatprep.subr.mxu0 0.0
        %699 = vmatpush1.msra.mxu0 0.0
        %700 = vmatprep.subr.mxu0 0.0
        %701 = vmatpush1.msra.mxu0 0.0
        %702 = vmatprep.subr.mxu0 0.0
        %703 = vmatpush1.msra.mxu0 0.0
        %704 = vmatprep.subr.mxu0 0.0
        %705 = vmatpush1.msra.mxu0 0.0
        %706 = vmatprep.subr.mxu0 0.0
        %707 = vmatpush1.msra.mxu0 0.0
        %708 = vmatprep.subr.mxu0 0.0
        %709 = vmatpush1.msra.mxu0 0.0
        %710 = vmatprep.subr.mxu0 0.0
        %711 = vmatpush1.msra.mxu0 0.0
        %712 = vmatprep.subr.mxu0 0.0
        %713 = vmatpush1.msra.mxu0 0.0
        %714 = vmatprep.subr.mxu0 0.0
        %715 = vmatpush1.msra.mxu0 0.0
        %716 = vmatprep.subr.mxu0 0.0
        %717 = vmatpush1.msra.mxu0 0.0
        %718 = vmatprep.subr.mxu0 0.0
        %719 = vmatpush1.msra.mxu0 0.0
        %720 = vmatprep.mubr.f32.mxu0 0.0
        %v721 = vand.u32 %v226, 4294901760
        %722 = vmatmul.mubr.f32.gmra.mrb[0].mxu0 %v721
        %v723 = vpop.f32.mrb[0].mxu0
        %v724 = vadd.f32 %v645, %v723
        %v725 = vpop.f32.mrb[0].mxu0
        %726 = vmatprep.mubr.f32.mxu0 0.0
        %v727 = vand.u32 %v229, 4294901760
        %728 = vmatmul.mubr.f32.gmra.mrb[0].mxu0 %v727
        %v729 = vpop.f32.mrb[0].mxu0
        %v730 = vadd.f32 %v651, %v729
        %v731 = vpop.f32.mrb[0].mxu0
        %732 = vdwg.mxu0
        %v734 = vsel %vm224, %v220, 0
        %v737 = vsel %vm224, %v221, 0
        %739 = vmatprep.subr.mxu0 0.0
        %v740 = vand.u32 %v724, 4294901760
        %741 = vmatpush1.msra.mxu0 %v740
        %742 = vmatprep.subr.mxu0 0.0
        %v743 = vand.u32 %v730, 4294901760
        %744 = vmatpush1.msra.mxu0 %v743
        %745 = vmatprep.subr.mxu0 0.0
        %746 = vmatpush1.msra.mxu0 0.0
        %747 = vmatprep.subr.mxu0 0.0
        %748 = vmatpush1.msra.mxu0 0.0
        %749 = vmatprep.subr.mxu0 0.0
        %750 = vmatpush1.msra.mxu0 0.0
        %751 = vmatprep.subr.mxu0 0.0
        %752 = vmatpush1.msra.mxu0 0.0
        %753 = vmatprep.subr.mxu0 0.0
        %754 = vmatpush1.msra.mxu0 0.0
        %755 = vmatprep.subr.mxu0 0.0
        %756 = vmatpush1.msra.mxu0 0.0
        %757 = vmatprep.subr.mxu0 0.0
        %758 = vmatpush1.msra.mxu0 0.0
        %759 = vmatprep.subr.mxu0 0.0
        %760 = vmatpush1.msra.mxu0 0.0
        %761 = vmatprep.subr.mxu0 0.0
        %762 = vmatpush1.msra.mxu0 0.0
        %763 = vmatprep.subr.mxu0 0.0
        %764 = vmatpush1.msra.mxu0 0.0
        %765 = vmatprep.subr.mxu0 0.0
        %766 = vmatpush1.msra.mxu0 0.0
        %767 = vmatprep.subr.mxu0 0.0
        %768 = vmatpush1.msra.mxu0 0.0
        %769 = vmatprep.subr.mxu0 0.0
        %770 = vmatpush1.msra.mxu0 0.0
        %771 = vmatprep.subr.mxu0 0.0
        %772 = vmatpush1.msra.mxu0 0.0
        %773 = vmatprep.subr.mxu0 0.0
        %774 = vmatpush1.msra.mxu0 0.0
        %775 = vmatprep.subr.mxu0 0.0
        %776 = vmatpush1.msra.mxu0 0.0
        %777 = vmatprep.subr.mxu0 0.0
        %778 = vmatpush1.msra.mxu0 0.0
        %779 = vmatprep.subr.mxu0 0.0
        %780 = vmatpush1.msra.mxu0 0.0
        %781 = vmatprep.subr.mxu0 0.0
        %782 = vmatpush1.msra.mxu0 0.0
        %783 = vmatprep.subr.mxu0 0.0
        %784 = vmatpush1.msra.mxu0 0.0
        %785 = vmatprep.subr.mxu0 0.0
        %786 = vmatpush1.msra.mxu0 0.0
        %787 = vmatprep.subr.mxu0 0.0
        %788 = vmatpush1.msra.mxu0 0.0
        %789 = vmatprep.subr.mxu0 0.0
        %790 = vmatpush1.msra.mxu0 0.0
        %791 = vmatprep.subr.mxu0 0.0
        %792 = vmatpush1.msra.mxu0 0.0
        %793 = vmatprep.subr.mxu0 0.0
        %794 = vmatpush1.msra.mxu0 0.0
        %795 = vmatprep.subr.mxu0 0.0
        %796 = vmatpush1.msra.mxu0 0.0
        %797 = vmatprep.subr.mxu0 0.0
        %798 = vmatpush1.msra.mxu0 0.0
        %799 = vmatprep.subr.mxu0 0.0
        %800 = vmatpush1.msra.mxu0 0.0
        %801 = vmatprep.subr.mxu0 0.0
        %802 = vmatpush1.msra.mxu0 0.0
        %803 = vmatprep.subr.mxu0 0.0
        %804 = vmatpush1.msra.mxu0 0.0
        %805 = vmatprep.mubr.f32.mxu0 0.0
        %v806 = vand.u32 %v734, 4294901760
        %v807 = vsub.f32 %v734, %v806
        %v808 = vand.u32 %v807, 4294901760
        %v809 = vsub.f32 %v807, %v808
        %v810 = vand.u32 %v809, 4294901760
        %811 = vmatmul.mubr.f32.gmra.mrb[0].mxu0 %v810
        %v812 = vpop.f32.mrb[0].mxu0
        %v813 = vadd.f32 0.0, %v812
        %v814 = vpop.f32.mrb[0].mxu0
        %815 = vmatprep.mubr.f32.mxu0 0.0
        %v816 = vand.u32 %v737, 4294901760
        %v817 = vsub.f32 %v737, %v816
        %v818 = vand.u32 %v817, 4294901760
        %v819 = vsub.f32 %v817, %v818
        %v820 = vand.u32 %v819, 4294901760
        %821 = vmatmul.mubr.f32.gmra.mrb[0].mxu0 %v820
        %v822 = vpop.f32.mrb[0].mxu0
        %v823 = vadd.f32 0.0, %v822
        %v824 = vpop.f32.mrb[0].mxu0
        %825 = vdwg.mxu0
        %826 = vmatprep.subr.mxu0 0.0
        %v827 = vand.u32 %v724, 4294901760
        %v828 = vsub.f32 %v724, %v827
        %v829 = vand.u32 %v828, 4294901760
        %v830 = vsub.f32 %v828, %v829
        %v831 = vand.u32 %v830, 4294901760
        %832 = vmatpush1.msra.mxu0 %v831
        %833 = vmatprep.subr.mxu0 0.0
        %v834 = vand.u32 %v730, 4294901760
        %v835 = vsub.f32 %v730, %v834
        %v836 = vand.u32 %v835, 4294901760
        %v837 = vsub.f32 %v835, %v836
        %v838 = vand.u32 %v837, 4294901760
        %839 = vmatpush1.msra.mxu0 %v838
        %840 = vmatprep.subr.mxu0 0.0
        %841 = vmatpush1.msra.mxu0 0.0
        %842 = vmatprep.subr.mxu0 0.0
        %843 = vmatpush1.msra.mxu0 0.0
        %844 = vmatprep.subr.mxu0 0.0
        %845 = vmatpush1.msra.mxu0 0.0
        %846 = vmatprep.subr.mxu0 0.0
        %847 = vmatpush1.msra.mxu0 0.0
        %848 = vmatprep.subr.mxu0 0.0
        %849 = vmatpush1.msra.mxu0 0.0
        %850 = vmatprep.subr.mxu0 0.0
        %851 = vmatpush1.msra.mxu0 0.0
        %852 = vmatprep.subr.mxu0 0.0
        %853 = vmatpush1.msra.mxu0 0.0
        %854 = vmatprep.subr.mxu0 0.0
        %855 = vmatpush1.msra.mxu0 0.0
        %856 = vmatprep.subr.mxu0 0.0
        %857 = vmatpush1.msra.mxu0 0.0
        %858 = vmatprep.subr.mxu0 0.0
        %859 = vmatpush1.msra.mxu0 0.0
        %860 = vmatprep.subr.mxu0 0.0
        %861 = vmatpush1.msra.mxu0 0.0
        %862 = vmatprep.subr.mxu0 0.0
        %863 = vmatpush1.msra.mxu0 0.0
        %864 = vmatprep.subr.mxu0 0.0
        %865 = vmatpush1.msra.mxu0 0.0
        %866 = vmatprep.subr.mxu0 0.0
        %867 = vmatpush1.msra.mxu0 0.0
        %868 = vmatprep.subr.mxu0 0.0
        %869 = vmatpush1.msra.mxu0 0.0
        %870 = vmatprep.subr.mxu0 0.0
        %871 = vmatpush1.msra.mxu0 0.0
        %872 = vmatprep.subr.mxu0 0.0
        %873 = vmatpush1.msra.mxu0 0.0
        %874 = vmatprep.subr.mxu0 0.0
        %875 = vmatpush1.msra.mxu0 0.0
        %876 = vmatprep.subr.mxu0 0.0
        %877 = vmatpush1.msra.mxu0 0.0
        %878 = vmatprep.subr.mxu0 0.0
        %879 = vmatpush1.msra.mxu0 0.0
        %880 = vmatprep.subr.mxu0 0.0
        %881 = vmatpush1.msra.mxu0 0.0
        %882 = vmatprep.subr.mxu0 0.0
        %883 = vmatpush1.msra.mxu0 0.0
        %884 = vmatprep.subr.mxu0 0.0
        %885 = vmatpush1.msra.mxu0 0.0
        %886 = vmatprep.subr.mxu0 0.0
        %887 = vmatpush1.msra.mxu0 0.0
        %888 = vmatprep.subr.mxu0 0.0
        %889 = vmatpush1.msra.mxu0 0.0
        %890 = vmatprep.subr.mxu0 0.0
        %891 = vmatpush1.msra.mxu0 0.0
        %892 = vmatprep.subr.mxu0 0.0
        %893 = vmatpush1.msra.mxu0 0.0
        %894 = vmatprep.subr.mxu0 0.0
        %895 = vmatpush1.msra.mxu0 0.0
        %896 = vmatprep.subr.mxu0 0.0
        %897 = vmatpush1.msra.mxu0 0.0
        %898 = vmatprep.subr.mxu0 0.0
        %899 = vmatpush1.msra.mxu0 0.0
        %900 = vmatprep.mubr.f32.mxu0 0.0
        %v901 = vand.u32 %v734, 4294901760
        %902 = vmatmul.mubr.f32.gmra.mrb[0].mxu0 %v901
        %v903 = vpop.f32.mrb[0].mxu0
        %v904 = vadd.f32 %v813, %v903
        %v905 = vpop.f32.mrb[0].mxu0
        %906 = vmatprep.mubr.f32.mxu0 0.0
        %v907 = vand.u32 %v737, 4294901760
        %908 = vmatmul.mubr.f32.gmra.mrb[0].mxu0 %v907
        %v909 = vpop.f32.mrb[0].mxu0
        %v910 = vadd.f32 %v823, %v909
        %v911 = vpop.f32.mrb[0].mxu0
        %912 = vdwg.mxu0
        %913 = vmatprep.subr.mxu0 0.0
        %v914 = vand.u32 %v724, 4294901760
        %v915 = vsub.f32 %v724, %v914
        %916 = vmatpush1.msra.mxu0 %v915
        %917 = vmatprep.subr.mxu0 0.0
        %v918 = vand.u32 %v730, 4294901760
        %v919 = vsub.f32 %v730, %v918
        %920 = vmatpush1.msra.mxu0 %v919
        %921 = vmatprep.subr.mxu0 0.0
        %922 = vmatpush1.msra.mxu0 0.0
        %923 = vmatprep.subr.mxu0 0.0
        %924 = vmatpush1.msra.mxu0 0.0
        %925 = vmatprep.subr.mxu0 0.0
        %926 = vmatpush1.msra.mxu0 0.0
        %927 = vmatprep.subr.mxu0 0.0
        %928 = vmatpush1.msra.mxu0 0.0
        %929 = vmatprep.subr.mxu0 0.0
        %930 = vmatpush1.msra.mxu0 0.0
        %931 = vmatprep.subr.mxu0 0.0
        %932 = vmatpush1.msra.mxu0 0.0
        %933 = vmatprep.subr.mxu0 0.0
        %934 = vmatpush1.msra.mxu0 0.0
        %935 = vmatprep.subr.mxu0 0.0
        %936 = vmatpush1.msra.mxu0 0.0
        %937 = vmatprep.subr.mxu0 0.0
        %938 = vmatpush1.msra.mxu0 0.0
        %939 = vmatprep.subr.mxu0 0.0
        %940 = vmatpush1.msra.mxu0 0.0
        %941 = vmatprep.subr.mxu0 0.0
        %942 = vmatpush1.msra.mxu0 0.0
        %943 = vmatprep.subr.mxu0 0.0
        %944 = vmatpush1.msra.mxu0 0.0
        %945 = vmatprep.subr.mxu0 0.0
        %946 = vmatpush1.msra.mxu0 0.0
        %947 = vmatprep.subr.mxu0 0.0
        %948 = vmatpush1.msra.mxu0 0.0
        %949 = vmatprep.subr.mxu0 0.0
        %950 = vmatpush1.msra.mxu0 0.0
        %951 = vmatprep.subr.mxu0 0.0
        %952 = vmatpush1.msra.mxu0 0.0
        %953 = vmatprep.subr.mxu0 0.0
        %954 = vmatpush1.msra.mxu0 0.0
        %955 = vmatprep.subr.mxu0 0.0
        %956 = vmatpush1.msra.mxu0 0.0
        %957 = vmatprep.subr.mxu0 0.0
        %958 = vmatpush1.msra.mxu0 0.0
        %959 = vmatprep.subr.mxu0 0.0
        %960 = vmatpush1.msra.mxu0 0.0
        %961 = vmatprep.subr.mxu0 0.0
        %962 = vmatpush1.msra.mxu0 0.0
        %963 = vmatprep.subr.mxu0 0.0
        %964 = vmatpush1.msra.mxu0 0.0
        %965 = vmatprep.subr.mxu0 0.0
        %966 = vmatpush1.msra.mxu0 0.0
        %967 = vmatprep.subr.mxu0 0.0
        %968 = vmatpush1.msra.mxu0 0.0
        %969 = vmatprep.subr.mxu0 0.0
        %970 = vmatpush1.msra.mxu0 0.0
        %971 = vmatprep.subr.mxu0 0.0
        %972 = vmatpush1.msra.mxu0 0.0
        %973 = vmatprep.subr.mxu0 0.0
        %974 = vmatpush1.msra.mxu0 0.0
        %975 = vmatprep.subr.mxu0 0.0
        %976 = vmatpush1.msra.mxu0 0.0
        %977 = vmatprep.subr.mxu0 0.0
        %978 = vmatpush1.msra.mxu0 0.0
        %979 = vmatprep.subr.mxu0 0.0
        %980 = vmatpush1.msra.mxu0 0.0
        %981 = vmatprep.mubr.f32.mxu0 0.0
        %v982 = vand.u32 %v734, 4294901760
        %v983 = vsub.f32 %v734, %v982
        %984 = vmatmul.mubr.f32.gmra.mrb[0].mxu0 %v983
        %v985 = vpop.f32.mrb[0].mxu0
        %v986 = vadd.f32 %v904, %v985
        %v987 = vpop.f32.mrb[0].mxu0
        %988 = vmatprep.mubr.f32.mxu0 0.0
        %v989 = vand.u32 %v737, 4294901760
        %v990 = vsub.f32 %v737, %v989
        %991 = vmatmul.mubr.f32.gmra.mrb[0].mxu0 %v990
        %v992 = vpop.f32.mrb[0].mxu0
        %v993 = vadd.f32 %v910, %v992
        %v994 = vpop.f32.mrb[0].mxu0
        %995 = vdwg.mxu0
        %996 = vmatprep.subr.mxu0 0.0
        %v997 = vand.u32 %v724, 4294901760
        %998 = vmatpush1.msra.mxu0 %v997
        %999 = vmatprep.subr.mxu0 0.0
        %v1000 = vand.u32 %v730, 4294901760
        %1001 = vmatpush1.msra.mxu0 %v1000
        %1002 = vmatprep.subr.mxu0 0.0
        %1003 = vmatpush1.msra.mxu0 0.0
        %1004 = vmatprep.subr.mxu0 0.0
        %1005 = vmatpush1.msra.mxu0 0.0
        %1006 = vmatprep.subr.mxu0 0.0
        %1007 = vmatpush1.msra.mxu0 0.0
        %1008 = vmatprep.subr.mxu0 0.0
        %1009 = vmatpush1.msra.mxu0 0.0
        %1010 = vmatprep.subr.mxu0 0.0
        %1011 = vmatpush1.msra.mxu0 0.0
        %1012 = vmatprep.subr.mxu0 0.0
        %1013 = vmatpush1.msra.mxu0 0.0
        %1014 = vmatprep.subr.mxu0 0.0
        %1015 = vmatpush1.msra.mxu0 0.0
        %1016 = vmatprep.subr.mxu0 0.0
        %1017 = vmatpush1.msra.mxu0 0.0
        %1018 = vmatprep.subr.mxu0 0.0
        %1019 = vmatpush1.msra.mxu0 0.0
        %1020 = vmatprep.subr.mxu0 0.0
        %1021 = vmatpush1.msra.mxu0 0.0
        %1022 = vmatprep.subr.mxu0 0.0
        %1023 = vmatpush1.msra.mxu0 0.0
        %1024 = vmatprep.subr.mxu0 0.0
        %1025 = vmatpush1.msra.mxu0 0.0
        %1026 = vmatprep.subr.mxu0 0.0
        %1027 = vmatpush1.msra.mxu0 0.0
        %1028 = vmatprep.subr.mxu0 0.0
        %1029 = vmatpush1.msra.mxu0 0.0
        %1030 = vmatprep.subr.mxu0 0.0
        %1031 = vmatpush1.msra.mxu0 0.0
        %1032 = vmatprep.subr.mxu0 0.0
        %1033 = vmatpush1.msra.mxu0 0.0
        %1034 = vmatprep.subr.mxu0 0.0
        %1035 = vmatpush1.msra.mxu0 0.0
        %1036 = vmatprep.subr.mxu0 0.0
        %1037 = vmatpush1.msra.mxu0 0.0
        %1038 = vmatprep.subr.mxu0 0.0
        %1039 = vmatpush1.msra.mxu0 0.0
        %1040 = vmatprep.subr.mxu0 0.0
        %1041 = vmatpush1.msra.mxu0 0.0
        %1042 = vmatprep.subr.mxu0 0.0
        %1043 = vmatpush1.msra.mxu0 0.0
        %1044 = vmatprep.subr.mxu0 0.0
        %1045 = vmatpush1.msra.mxu0 0.0
        %1046 = vmatprep.subr.mxu0 0.0
        %1047 = vmatpush1.msra.mxu0 0.0
        %1048 = vmatprep.subr.mxu0 0.0
        %1049 = vmatpush1.msra.mxu0 0.0
        %1050 = vmatprep.subr.mxu0 0.0
        %1051 = vmatpush1.msra.mxu0 0.0
        %1052 = vmatprep.subr.mxu0 0.0
        %1053 = vmatpush1.msra.mxu0 0.0
        %1054 = vmatprep.subr.mxu0 0.0
        %1055 = vmatpush1.msra.mxu0 0.0
        %1056 = vmatprep.subr.mxu0 0.0
        %1057 = vmatpush1.msra.mxu0 0.0
        %1058 = vmatprep.subr.mxu0 0.0
        %1059 = vmatpush1.msra.mxu0 0.0
        %1060 = vmatprep.subr.mxu0 0.0
        %1061 = vmatpush1.msra.mxu0 0.0
        %1062 = vmatprep.mubr.f32.mxu0 0.0
        %v1063 = vand.u32 %v734, 4294901760
        %v1064 = vsub.f32 %v734, %v1063
        %v1065 = vand.u32 %v1064, 4294901760
        %1066 = vmatmul.mubr.f32.gmra.mrb[0].mxu0 %v1065
        %v1067 = vpop.f32.mrb[0].mxu0
        %v1068 = vadd.f32 %v986, %v1067
        %v1069 = vpop.f32.mrb[0].mxu0
        %1070 = vmatprep.mubr.f32.mxu0 0.0
        %v1071 = vand.u32 %v737, 4294901760
        %v1072 = vsub.f32 %v737, %v1071
        %v1073 = vand.u32 %v1072, 4294901760
        %1074 = vmatmul.mubr.f32.gmra.mrb[0].mxu0 %v1073
        %v1075 = vpop.f32.mrb[0].mxu0
        %v1076 = vadd.f32 %v993, %v1075
        %v1077 = vpop.f32.mrb[0].mxu0
        %1078 = vdwg.mxu0
        %1079 = vmatprep.subr.mxu0 0.0
        %v1080 = vand.u32 %v724, 4294901760
        %v1081 = vsub.f32 %v724, %v1080
        %v1082 = vand.u32 %v1081, 4294901760
        %1083 = vmatpush1.msra.mxu0 %v1082
        %1084 = vmatprep.subr.mxu0 0.0
        %v1085 = vand.u32 %v730, 4294901760
        %v1086 = vsub.f32 %v730, %v1085
        %v1087 = vand.u32 %v1086, 4294901760
        %1088 = vmatpush1.msra.mxu0 %v1087
        %1089 = vmatprep.subr.mxu0 0.0
        %1090 = vmatpush1.msra.mxu0 0.0
        %1091 = vmatprep.subr.mxu0 0.0
        %1092 = vmatpush1.msra.mxu0 0.0
        %1093 = vmatprep.subr.mxu0 0.0
        %1094 = vmatpush1.msra.mxu0 0.0
        %1095 = vmatprep.subr.mxu0 0.0
        %1096 = vmatpush1.msra.mxu0 0.0
        %1097 = vmatprep.subr.mxu0 0.0
        %1098 = vmatpush1.msra.mxu0 0.0
        %1099 = vmatprep.subr.mxu0 0.0
        %1100 = vmatpush1.msra.mxu0 0.0
        %1101 = vmatprep.subr.mxu0 0.0
        %1102 = vmatpush1.msra.mxu0 0.0
        %1103 = vmatprep.subr.mxu0 0.0
        %1104 = vmatpush1.msra.mxu0 0.0
        %1105 = vmatprep.subr.mxu0 0.0
        %1106 = vmatpush1.msra.mxu0 0.0
        %1107 = vmatprep.subr.mxu0 0.0
        %1108 = vmatpush1.msra.mxu0 0.0
        %1109 = vmatprep.subr.mxu0 0.0
        %1110 = vmatpush1.msra.mxu0 0.0
        %1111 = vmatprep.subr.mxu0 0.0
        %1112 = vmatpush1.msra.mxu0 0.0
        %1113 = vmatprep.subr.mxu0 0.0
        %1114 = vmatpush1.msra.mxu0 0.0
        %1115 = vmatprep.subr.mxu0 0.0
        %1116 = vmatpush1.msra.mxu0 0.0
        %1117 = vmatprep.subr.mxu0 0.0
        %1118 = vmatpush1.msra.mxu0 0.0
        %1119 = vmatprep.subr.mxu0 0.0
        %1120 = vmatpush1.msra.mxu0 0.0
        %1121 = vmatprep.subr.mxu0 0.0
        %1122 = vmatpush1.msra.mxu0 0.0
        %1123 = vmatprep.subr.mxu0 0.0
        %1124 = vmatpush1.msra.mxu0 0.0
        %1125 = vmatprep.subr.mxu0 0.0
        %1126 = vmatpush1.msra.mxu0 0.0
        %1127 = vmatprep.subr.mxu0 0.0
        %1128 = vmatpush1.msra.mxu0 0.0
        %1129 = vmatprep.subr.mxu0 0.0
        %1130 = vmatpush1.msra.mxu0 0.0
        %1131 = vmatprep.subr.mxu0 0.0
        %1132 = vmatpush1.msra.mxu0 0.0
        %1133 = vmatprep.subr.mxu0 0.0
        %1134 = vmatpush1.msra.mxu0 0.0
        %1135 = vmatprep.subr.mxu0 0.0
        %1136 = vmatpush1.msra.mxu0 0.0
        %1137 = vmatprep.subr.mxu0 0.0
        %1138 = vmatpush1.msra.mxu0 0.0
        %1139 = vmatprep.subr.mxu0 0.0
        %1140 = vmatpush1.msra.mxu0 0.0
        %1141 = vmatprep.subr.mxu0 0.0
        %1142 = vmatpush1.msra.mxu0 0.0
        %1143 = vmatprep.subr.mxu0 0.0
        %1144 = vmatpush1.msra.mxu0 0.0
        %1145 = vmatprep.subr.mxu0 0.0
        %1146 = vmatpush1.msra.mxu0 0.0
        %1147 = vmatprep.subr.mxu0 0.0
        %1148 = vmatpush1.msra.mxu0 0.0
        %1149 = vmatprep.mubr.f32.mxu0 0.0
        %v1150 = vand.u32 %v734, 4294901760
        %1151 = vmatmul.mubr.f32.gmra.mrb[0].mxu0 %v1150
        %v1152 = vpop.f32.mrb[0].mxu0
        %v1153 = vadd.f32 %v1068, %v1152
        %v1154 = vpop.f32.mrb[0].mxu0
        %1155 = vmatprep.mubr.f32.mxu0 0.0
        %v1156 = vand.u32 %v737, 4294901760
        %1157 = vmatmul.mubr.f32.gmra.mrb[0].mxu0 %v1156
        %v1158 = vpop.f32.mrb[0].mxu0
        %v1159 = vadd.f32 %v1076, %v1158
        %v1160 = vpop.f32.mrb[0].mxu0
        %1161 = vdwg.mxu0
        %1162 = vmatprep.subr.mxu0 0.0
        %v1163 = vand.u32 %v724, 4294901760
        %1164 = vmatpush1.msra.mxu0 %v1163
        %1165 = vmatprep.subr.mxu0 0.0
        %v1166 = vand.u32 %v730, 4294901760
        %1167 = vmatpush1.msra.mxu0 %v1166
        %1168 = vmatprep.subr.mxu0 0.0
        %1169 = vmatpush1.msra.mxu0 0.0
        %1170 = vmatprep.subr.mxu0 0.0
        %1171 = vmatpush1.msra.mxu0 0.0
        %1172 = vmatprep.subr.mxu0 0.0
        %1173 = vmatpush1.msra.mxu0 0.0
        %1174 = vmatprep.subr.mxu0 0.0
        %1175 = vmatpush1.msra.mxu0 0.0
        %1176 = vmatprep.subr.mxu0 0.0
        %1177 = vmatpush1.msra.mxu0 0.0
        %1178 = vmatprep.subr.mxu0 0.0
        %1179 = vmatpush1.msra.mxu0 0.0
        %1180 = vmatprep.subr.mxu0 0.0
        %1181 = vmatpush1.msra.mxu0 0.0
        %1182 = vmatprep.subr.mxu0 0.0
        %1183 = vmatpush1.msra.mxu0 0.0
        %1184 = vmatprep.subr.mxu0 0.0
        %1185 = vmatpush1.msra.mxu0 0.0
        %1186 = vmatprep.subr.mxu0 0.0
        %1187 = vmatpush1.msra.mxu0 0.0
        %1188 = vmatprep.subr.mxu0 0.0
        %1189 = vmatpush1.msra.mxu0 0.0
        %1190 = vmatprep.subr.mxu0 0.0
        %1191 = vmatpush1.msra.mxu0 0.0
        %1192 = vmatprep.subr.mxu0 0.0
        %1193 = vmatpush1.msra.mxu0 0.0
        %1194 = vmatprep.subr.mxu0 0.0
        %1195 = vmatpush1.msra.mxu0 0.0
        %1196 = vmatprep.subr.mxu0 0.0
        %1197 = vmatpush1.msra.mxu0 0.0
        %1198 = vmatprep.subr.mxu0 0.0
        %1199 = vmatpush1.msra.mxu0 0.0
        %1200 = vmatprep.subr.mxu0 0.0
        %1201 = vmatpush1.msra.mxu0 0.0
        %1202 = vmatprep.subr.mxu0 0.0
        %1203 = vmatpush1.msra.mxu0 0.0
        %1204 = vmatprep.subr.mxu0 0.0
        %1205 = vmatpush1.msra.mxu0 0.0
        %1206 = vmatprep.subr.mxu0 0.0
        %1207 = vmatpush1.msra.mxu0 0.0
        %1208 = vmatprep.subr.mxu0 0.0
        %1209 = vmatpush1.msra.mxu0 0.0
        %1210 = vmatprep.subr.mxu0 0.0
        %1211 = vmatpush1.msra.mxu0 0.0
        %1212 = vmatprep.subr.mxu0 0.0
        %1213 = vmatpush1.msra.mxu0 0.0
        %1214 = vmatprep.subr.mxu0 0.0
        %1215 = vmatpush1.msra.mxu0 0.0
        %1216 = vmatprep.subr.mxu0 0.0
        %1217 = vmatpush1.msra.mxu0 0.0
        %1218 = vmatprep.subr.mxu0 0.0
        %1219 = vmatpush1.msra.mxu0 0.0
        %1220 = vmatprep.subr.mxu0 0.0
        %1221 = vmatpush1.msra.mxu0 0.0
        %1222 = vmatprep.subr.mxu0 0.0
        %1223 = vmatpush1.msra.mxu0 0.0
        %1224 = vmatprep.subr.mxu0 0.0
        %1225 = vmatpush1.msra.mxu0 0.0
        %1226 = vmatprep.subr.mxu0 0.0
        %1227 = vmatpush1.msra.mxu0 0.0
        %1228 = vmatprep.mubr.f32.mxu0 0.0
        %v1229 = vand.u32 %v734, 4294901760
        %1230 = vmatmul.mubr.f32.gmra.mrb[0].mxu0 %v1229
        %v1231 = vpop.f32.mrb[0].mxu0
        %v1232 = vadd.f32 %v1153, %v1231
        %v1233 = vpop.f32.mrb[0].mxu0
        %1234 = vmatprep.mubr.f32.mxu0 0.0
        %v1235 = vand.u32 %v737, 4294901760
        %1236 = vmatmul.mubr.f32.gmra.mrb[0].mxu0 %v1235
        %v1237 = vpop.f32.mrb[0].mxu0
        %v1238 = vadd.f32 %v1159, %v1237
        %v1239 = vpop.f32.mrb[0].mxu0
        %1240 = vdwg.mxu0
        %v1241 = vsub.f32 %v222, %v1232
        %v1242 = vsub.f32 %v223, %v1238
        %1243 = vst.msk [vmem:[%s217] sm:$0xff] %vm224, %v1241
        %1244 = vst.msk [vmem:[%s217 + $0x8] sm:$0xff] %vm224, %v1242
        %s1245 = sand.u32 %s97, 1
        %s1246 = scalar_lea.sflag [#allocation4], %s1245
        %s1247 = sand.u32 %s97, 1
        %s1248 = smul.addr %s1247, 16
        %s1249 = scalar_lea.vmem [#allocation8], %s1248
        // Predicated region
        $region45: #{tpu_custom_call.1} parent=31 // pred_check
          %p1250 = pneg %p107
        $region46: #{tpu_custom_call.1} parent=31 // pred_check_branch
          %1252 = sbr.rel (%p1250) target = $region48
        $region47: #{tpu_custom_call.1} parent=31 // pred_region
          %s1254 = ssub.s32 256, 256
          %1255 = vsyncadd %s1246, %s1254
          %s1256 = smul.addr %s21, 2
          %s1257 = smul.addr %s1256, 128
          %s1258 = scalar_lea.hbm %s3, %s1257
          %s1259 = sshll.u32 %s1249, 4
          %s1260 = int_to_ptr.vmem [resolvable:$true] %s1259
          %1265 = dma.vmem_to_hbm [thread:$0]  %s1260, 256, %s1258, %s1246, 128, 128, 8
        $region48: #{tpu_custom_call.1} parent=31 // pred_fallthru
          _
      $region32: #{tpu_custom_call.1} parent=5 // pred_fallthru
        _
      %p1266 = scmp.le.s32.totalorder 2, %s16
      // Predicated region
      $region49: #{tpu_custom_call.1} parent=5 // pred_check
        %p1267 = pneg %p1266
      $region50: #{tpu_custom_call.1} parent=5 // pred_check_branch
        %1269 = sbr.rel (%p1267) target = $region52
      $region51: #{tpu_custom_call.1} parent=5 // pred_region
        %s1270 = ssub.s32 %s16, 2
        // Predicated region
        $region53: #{tpu_custom_call.1} parent=51 // pred_check
          %p1271 = pneg %p113
        $region54: #{tpu_custom_call.1} parent=51 // pred_check_branch
          %1273 = sbr.rel (%p1271) target = $region56
        $region55: #{tpu_custom_call.1} parent=51 // pred_region
          %s1274 = sand.u32 %s98, 1
          %s1275 = scalar_lea.sflag [#allocation4], %s1274
          %s1276 = sand.u32 %s98, 1
          %s1277 = smul.addr %s1276, 16
          %s1278 = scalar_lea.vmem [#allocation8], %s1277
          %1279 = dma.done %s1275, 256
        $region56: #{tpu_custom_call.1} parent=51 // pred_fallthru
          _
      $region52: #{tpu_custom_call.1} parent=5 // pred_fallthru
        _
    $region6: #{tpu_custom_call.1} parent=1 // loop_footer
      %s20 = sadd.s32 1, %s16
    $region7: #{tpu_custom_call.1} parent=1 // loop_footer_branch
      %15 = sbr.rel target = $region3
    $region8: #{tpu_custom_call.1} parent=1 // loop_exit
      _
    %1280 = vsyncpa [#allocation3], 1
    %s1281 = scalar_lea.sflag [#allocation3], 1
    %1282 = vsyncpa %s1281, 1
    %1283 = vsyncpa [#allocation6], 1
    %1284 = vsyncpa [#allocation4], 1
    %s1285 = scalar_lea.sflag [#allocation4], 1
    %1286 = vsyncpa %s1285, 1

</llo_original>
